<compile_context>
chip_gen: v5e
topology: v5e:2x2
jax: 0.10.0
libtpu: 0.0.40
codegen_flags: <defaults>
</compile_context>

<pallas_src>
import functools

import jax
import jax.numpy as jnp
from jax.experimental import pallas as pl
from jax.experimental.pallas import tpu as pltpu

GAMMA = 2.0
_MIB = 1024 * 1024


def _round_up(x, m):
    return ((x + m - 1) // m) * m


def _vmem_plan():
    """Generation-gated (vmem_limit_bytes, tile working-set budget)."""
    try:
        cap = pltpu.get_tpu_info().vmem_capacity_bytes
    except Exception:          # unknown backend / interpret mode -> conservative
        cap = 64 * _MIB
    if cap >= 128 * _MIB:      # v5e / v6e: 128 MiB physical VMEM
        return 96 * _MIB, 64 * _MIB
    return 32 * _MIB, 24 * _MIB   # v7x: 64 MiB physical VMEM


def _focal_ce_kernel(pred_ref, label_ref, out_ref, acc_ref, *,
                     gamma, n_total, tb, steps):
    core = pl.program_id(0)     # "parallel" axis: 2-way TensorCore split (v7x)
    step = pl.program_id(1)     # "arbitrary" axis: streaming reduction over batch tiles

    @pl.when(step == 0)
    def _():
        acc_ref[...] = jnp.zeros_like(acc_ref)

    logits = pred_ref[...].astype(jnp.float32)            # [tb, C] (bf16 -> f32 in VMEM)
    labels = label_ref[...].astype(jnp.int32)              # [tb, 1]

    # Numerically stable log-softmax pieces; only the label column is needed.
    m = jnp.max(logits, axis=-1, keepdims=True)             # [tb, 1]
    shifted = logits - m                                     # [tb, C]
    lse = jnp.log(jnp.sum(jnp.exp(shifted), axis=-1, keepdims=True))   # [tb, 1]

    # (1, C) iota broadcast against [tb, 1] labels: no [tb, C] int32 temporary.
    # NOTE: labels are assumed in [0, C) (torch F.one_hot raises otherwise).
    cls_idx = jax.lax.broadcasted_iota(jnp.int32, (1, logits.shape[1]), 1)
    shifted_label = jnp.sum(
        jnp.where(cls_idx == labels, shifted, 0.0), axis=-1, keepdims=True)   # [tb, 1]

    log_p = shifted_label - lse                              # [tb, 1] = log p_label
    p = jnp.exp(log_p)                                       # [tb, 1] = p_label
    one_minus_p = 1.0 - p

    # Static (trace-time) fast paths for the focal exponent.
    if gamma == 2.0:
        fw = one_minus_p * one_minus_p                        # VPU mul, no EUP pow
    elif gamma == 1.0:
        fw = one_minus_p
    elif gamma == 0.0:
        fw = jnp.ones_like(one_minus_p)
    elif float(gamma).is_integer() and gamma > 0:
        fw = one_minus_p ** int(gamma)
    else:
        fw = jnp.power(one_minus_p, jnp.float32(gamma))

    loss_row = fw * (-log_p)                                  # [tb, 1]

    # Mask rows past the true batch (ragged last tile / clamped duplicate block).
    # Keep this a SELECT: padded rows can hold Inf/NaN and a multiply-mask would
    # propagate them into the accumulator.
    blk = core * steps + step                                 # unclamped logical block index
    row_ids = blk * tb + jax.lax.broadcasted_iota(jnp.int32, (tb, 1), 0)
    loss_row = jnp.where(row_ids < n_total, loss_row, 0.0)

    acc_ref[...] += loss_row                                  # cheap [tb,1] VPU add

    @pl.when(step == steps - 1)
    def _():
        partial = jnp.sum(acc_ref[...])                       # per-core partial sum
        out_ref[...] = jnp.zeros_like(out_ref) + partial


def focal_ce_loss(pred, label, *, gamma=GAMMA, max_tile_rows=None):
    """pred: [N, C] float32/bfloat16 logits, label: [N] int -> scalar float32."""
    n, c = pred.shape
    label2d = label.astype(jnp.int32).reshape(n, 1)

    vmem_limit_bytes, tile_budget = _vmem_plan()

    # Honest per-row VMEM accounting (last dims lane-pad to 128 in VMEM).
    c_pad = _round_up(c, 128)
    itemsize = jnp.dtype(pred.dtype).itemsize
    row_bytes = (
        2 * c_pad * itemsize        # double-buffered pred input tile
        + 2 * 128 * 4               # double-buffered (tb,1) int32 labels (lane padded)
        + 3 * c_pad * 4             # f32 temps: cast logits, shifted, exp(shifted)
        + 4 * 128 * 4               # acc scratch + live (tb,1) f32 column temps
    )
    tb_target = max(8, int(tile_budget) // row_bytes)
    if max_tile_rows is not None:
        tb_target = min(tb_target, max(8, int(max_tile_rows)))

    if n < 8:
        tb = n                                        # single full-array block
    else:
        tb = max(8, min((tb_target // 8) * 8, (n // 8) * 8, 16384))

    total_blocks = pl.cdiv(n, tb)
    n_par = 2                                         # 2 TensorCores on v7x; harmless elsewhere
    steps = pl.cdiv(total_blocks, n_par)
    last_blk = total_blocks - 1

    def row_block(ci, si):
        # Clamp so tail-duplicate blocks still read a valid tile; the in-kernel
        # row mask (from the UNCLAMPED index) zeroes their contribution.
        return jnp.minimum(ci * steps + si, last_blk)

    kernel = functools.partial(
        _focal_ce_kernel, gamma=float(gamma), n_total=n, tb=tb, steps=steps)

    out = pl.pallas_call(
        kernel,
        out_shape=jax.ShapeDtypeStruct((n_par, 8, 128), jnp.float32),
        grid_spec=pltpu.PrefetchScalarGridSpec(
            num_scalar_prefetch=0,
            grid=(n_par, steps),
            in_specs=[
                pl.BlockSpec((tb, c), lambda ci, si: (row_block(ci, si), 0)),
                pl.BlockSpec((tb, 1), lambda ci, si: (row_block(ci, si), 0)),
            ],
            out_specs=pl.BlockSpec((1, 8, 128), lambda ci, si: (ci, 0, 0)),
            scratch_shapes=[pltpu.VMEM((tb, 1), jnp.float32)],
        ),
        compiler_params=pltpu.CompilerParams(
            dimension_semantics=("parallel", "arbitrary"),
            vmem_limit_bytes=vmem_limit_bytes,
        ),
    )(pred, label2d)

    partials = out[:, 0, 0]                           # one partial sum per core
    return jnp.sum(partials) / jnp.float32(n)


def _reference(pred, label, gamma=GAMMA):
    p = jax.nn.softmax(pred, axis=1)
    oh = jax.nn.one_hot(label, pred.shape[1], dtype=jnp.float32)
    pt = jnp.where(oh == 1.0, p, 1.0 - p)
    fw = jnp.power(1.0 - pt, gamma)
    loss = fw * (-jnp.log(p)) * oh
    return jnp.mean(jnp.sum(loss, axis=1))


if __name__ == "__main__":
    key = jax.random.PRNGKey(0)
    k1, k2, k3, k4, k5 = jax.random.split(key, 5)

    # Case 1: small classification problem (16 samples, 32 classes), f32.
    N, C = 16, 32
    pred = jax.random.normal(k1, (N, C), dtype=jnp.float32) * 3.0
    label = jax.random.randint(k2, (N,), 0, C, dtype=jnp.int32)
    out = jax.block_until_ready(focal_ce_loss(pred, label))
    ref = _reference(pred, label)
    assert jnp.allclose(out, ref, atol=1e-5, rtol=1e-5), (out, ref)

    # Case 2: ragged batch + forced small tiles -> multi-step accumulation,
    # clamped duplicate tail block on the second core, and ragged row mask.
    N2 = 21
    pred2 = jax.random.normal(k3, (N2, C), dtype=jnp.float32) * 2.0
    label2 = jax.random.randint(k2, (N2,), 0, C, dtype=jnp.int32)
    out2 = jax.block_until_ready(focal_ce_loss(pred2, label2, max_tile_rows=8))
    ref2 = _reference(pred2, label2)
    assert jnp.allclose(out2, ref2, atol=1e-5, rtol=1e-5), (out2, ref2)

    # Case 3: bf16 logits consumed directly (cast to f32 in VMEM, not in HBM).
    pred_bf16 = pred.astype(jnp.bfloat16)
    out3 = jax.block_until_ready(focal_ce_loss(pred_bf16, label))
    ref3 = _reference(pred_bf16.astype(jnp.float32), label)
    assert jnp.allclose(out3, ref3, atol=5e-3, rtol=5e-3), (out3, ref3)

    # Case 4: both parallel "cores" carry real work, non-multiple-of-8 batch,
    # class count not a multiple of 128.
    N4, C4 = 300, 40
    pred4 = jax.random.normal(k4, (N4, C4), dtype=jnp.float32) * 2.0
    label4 = jax.random.randint(k5, (N4,), 0, C4, dtype=jnp.int32)
    out4 = jax.block_until_ready(focal_ce_loss(pred4, label4))
    ref4 = _reference(pred4, label4)
    assert jnp.allclose(out4, ref4, atol=1e-5, rtol=1e-5), (out4, ref4)

    print("KERNEL_OK")
</pallas_src>

<mosaic_0001>
module attributes {stable_mosaic.version = 11 : i64} {
  func.func @_focal_ce_kernel(%arg0: i32, %arg1: i32, %arg2: memref<16x32xf32, #tpu.memory_space<vmem>>, %arg3: memref<16x1xi32, #tpu.memory_space<vmem>>, %arg4: memref<1x8x128xf32, #tpu.memory_space<vmem>>, %arg5: memref<16x1xf32, #tpu.memory_space<vmem>>) attributes {dimension_semantics = [#tpu.dimension_semantics<parallel>, #tpu.dimension_semantics<arbitrary>], iteration_bounds = array<i64: 2, 1>, scalar_prefetch = 0 : i64, scratch_operands = 1 : i64, tpu.core_type = #tpu.core_type<tc>, window_params = [{transform_indices = @transform_0, window_bounds = array<i64: 16, 32>}, {transform_indices = @transform_1, window_bounds = array<i64: 16, 1>}, {transform_indices = @transform_2, window_bounds = array<i64: 1, 8, 128>}]} {
    %c0_i32 = arith.constant 0 : i32
    %0 = arith.cmpi eq, %arg1, %c0_i32 : i32
    %1 = arith.extui %0 : i1 to i32
    %c0_i32_0 = arith.constant 0 : i32
    %2 = arith.cmpi ne, %1, %c0_i32_0 : i32
    scf.if %2 {
      %cst_17 = arith.constant 0.000000e+00 : f32
      %45 = vector.broadcast %cst_17 : f32 to vector<16x1xf32>
      %c0_18 = arith.constant 0 : index
      %c0_19 = arith.constant 0 : index
      %46 = vector.load %arg5[%c0_18, %c0_19] : memref<16x1xf32, #tpu.memory_space<vmem>>, vector<16x1xf32>
      tpu.vector_store %arg5[%c0_18, %c0_19], %45 {strides = array<i32>} : memref<16x1xf32, #tpu.memory_space<vmem>>, vector<16x1xf32>,
    } else {
    }
    %c0 = arith.constant 0 : index
    %c0_1 = arith.constant 0 : index
    %3 = vector.load %arg2[%c0, %c0_1] : memref<16x32xf32, #tpu.memory_space<vmem>>, vector<16x32xf32>
    %c0_2 = arith.constant 0 : index
    %c0_3 = arith.constant 0 : index
    %4 = vector.load %arg3[%c0_2, %c0_3] : memref<16x1xi32, #tpu.memory_space<vmem>>, vector<16x1xi32>
    %cst = arith.constant dense<0xFF800000> : vector<16xf32>
    %5 = vector.multi_reduction <maximumf>, %3, %cst [1] : vector<16x32xf32> to vector<16xf32>
    %6 = vector.shape_cast %5 : vector<16xf32> to vector<16x1xf32>
    %7 = vector.broadcast %6 : vector<16x1xf32> to vector<16x32xf32>
    %8 = arith.subf %3, %7 : vector<16x32xf32>
    %9 = math.exp %8 : vector<16x32xf32>
    %cst_4 = arith.constant dense<0.000000e+00> : vector<16xf32>
    %10 = vector.multi_reduction <add>, %9, %cst_4 [1] : vector<16x32xf32> to vector<16xf32>
    %11 = vector.shape_cast %10 : vector<16xf32> to vector<16x1xf32>
    %12 = math.log %11 : vector<16x1xf32>
    %13 = tpu.iota {dimensions = array<i32: 1>} : vector<1x32xi32>
    %14 = vector.broadcast %13 : vector<1x32xi32> to vector<16x32xi32>
    %15 = vector.broadcast %4 : vector<16x1xi32> to vector<16x32xi32>
    %16 = arith.cmpi eq, %14, %15 : vector<16x32xi32>
    %cst_5 = arith.constant 0.000000e+00 : f32
    %17 = vector.broadcast %cst_5 : f32 to vector<16x32xf32>
    %18 = arith.select %16, %8, %17 : vector<16x32xi1>, vector<16x32xf32>
    %cst_6 = arith.constant dense<0.000000e+00> : vector<16xf32>
    %19 = vector.multi_reduction <add>, %18, %cst_6 [1] : vector<16x32xf32> to vector<16xf32>
    %20 = vector.shape_cast %19 : vector<16xf32> to vector<16x1xf32>
    %21 = arith.subf %20, %12 : vector<16x1xf32>
    %22 = math.exp %21 : vector<16x1xf32>
    %cst_7 = arith.constant 1.000000e+00 : f32
    %23 = vector.broadcast %cst_7 : f32 to vector<16x1xf32>
    %24 = arith.subf %23, %22 : vector<16x1xf32>
    %25 = arith.mulf %24, %24 : vector<16x1xf32>
    %cst_8 = arith.constant 0.000000e+00 : f32
    %26 = vector.broadcast %cst_8 : f32 to vector<16x1xf32>
    %27 = arith.subf %26, %21 : vector<16x1xf32>
    %28 = arith.mulf %25, %27 : vector<16x1xf32>
    %c1_i32 = arith.constant 1 : i32
    %29 = arith.muli %arg0, %c1_i32 : i32
    %30 = arith.addi %29, %arg1 : i32
    %c16_i32 = arith.constant 16 : i32
    %31 = arith.muli %30, %c16_i32 : i32
    %32 = tpu.iota {dimensions = array<i32: 0>} : vector<16x1xi32>
    %33 = vector.broadcast %31 : i32 to vector<16x1xi32>
    %34 = arith.addi %33, %32 : vector<16x1xi32>
    %c16_i32_9 = arith.constant 16 : i32
    %35 = vector.broadcast %c16_i32_9 : i32 to vector<16x1xi32>
    %36 = arith.cmpi slt, %34, %35 : vector<16x1xi32>
    %cst_10 = arith.constant 0.000000e+00 : f32
    %37 = vector.broadcast %cst_10 : f32 to vector<16x1xf32>
    %38 = arith.select %36, %28, %37 : vector<16x1xi1>, vector<16x1xf32>
    %c0_11 = arith.constant 0 : index
    %c0_12 = arith.constant 0 : index
    %39 = vector.load %arg5[%c0_11, %c0_12] : memref<16x1xf32, #tpu.memory_space<vmem>>, vector<16x1xf32>
    %40 = arith.addf %39, %38 : vector<16x1xf32>
    %c0_13 = arith.constant 0 : index
    %c0_14 = arith.constant 0 : index
    %41 = vector.load %arg5[%c0_13, %c0_14] : memref<16x1xf32, #tpu.memory_space<vmem>>, vector<16x1xf32>
    tpu.vector_store %arg5[%c0_13, %c0_14], %40 {strides = array<i32>} : memref<16x1xf32, #tpu.memory_space<vmem>>, vector<16x1xf32>,
    %c0_i32_15 = arith.constant 0 : i32
    %42 = arith.cmpi eq, %arg1, %c0_i32_15 : i32
    %43 = arith.extui %42 : i1 to i32
    %c0_i32_16 = arith.constant 0 : i32
    %44 = arith.cmpi ne, %43, %c0_i32_16 : i32
    scf.if %44 {
      %c0_17 = arith.constant 0 : index
      %c0_18 = arith.constant 0 : index
      %45 = vector.load %arg5[%c0_17, %c0_18] : memref<16x1xf32, #tpu.memory_space<vmem>>, vector<16x1xf32>
      %46 = vector.shape_cast %45 : vector<16x1xf32> to vector<1x16x1xf32>
      %cst_19 = arith.constant dense<0.000000e+00> : vector<1xf32>
      %47 = vector.multi_reduction <add>, %46, %cst_19 [1, 2] : vector<1x16x1xf32> to vector<1xf32>
      %48 = vector.shape_cast %47 : vector<1xf32> to vector<1x1x1xf32>
      %49 = vector.extract %48[0, 0, 0] : f32 from vector<1x1x1xf32>
      %cst_20 = arith.constant 0.000000e+00 : f32
      %50 = vector.broadcast %cst_20 : f32 to vector<1x8x128xf32>
      %51 = vector.broadcast %49 : f32 to vector<1x8x128xf32>
      %52 = arith.addf %50, %51 : vector<1x8x128xf32>
      %c0_21 = arith.constant 0 : index
      %c0_22 = arith.constant 0 : index
      %c0_23 = arith.constant 0 : index
      %53 = vector.load %arg4[%c0_21, %c0_22, %c0_23] : memref<1x8x128xf32, #tpu.memory_space<vmem>>, vector<1x8x128xf32>
      tpu.vector_store %arg4[%c0_21, %c0_22, %c0_23], %52 {strides = array<i32>} : memref<1x8x128xf32, #tpu.memory_space<vmem>>, vector<1x8x128xf32>,
    } else {
    }
    return
  }
  func.func @transform_0(%arg0: i32, %arg1: i32) -> (i32, i32) {
    %c1_i32 = arith.constant 1 : i32
    %0 = arith.muli %arg0, %c1_i32 : i32
    %1 = arith.addi %0, %arg1 : i32
    %c0_i32 = arith.constant 0 : i32
    %2 = arith.minsi %1, %c0_i32 : i32
    %c0_i32_0 = arith.constant 0 : i32
    %c0_i32_1 = arith.constant 0 : i32
    return %2, %c0_i32_0 : i32, i32
  }
  func.func @transform_1(%arg0: i32, %arg1: i32) -> (i32, i32) {
    %c1_i32 = arith.constant 1 : i32
    %0 = arith.muli %arg0, %c1_i32 : i32
    %1 = arith.addi %0, %arg1 : i32
    %c0_i32 = arith.constant 0 : i32
    %2 = arith.minsi %1, %c0_i32 : i32
    %c0_i32_0 = arith.constant 0 : i32
    %c0_i32_1 = arith.constant 0 : i32
    return %2, %c0_i32_0 : i32, i32
  }
  func.func @transform_2(%arg0: i32, %arg1: i32) -> (i32, i32, i32) {
    %c0_i32 = arith.constant 0 : i32
    %c0_i32_0 = arith.constant 0 : i32
    %c0_i32_1 = arith.constant 0 : i32
    return %arg0, %c0_i32, %c0_i32_0 : i32, i32, i32
  }
}

</mosaic_0001>

<llo_original>
// kernel: tpu_custom_call.1
$region0: #{tpu_custom_call.1}
  #allocation0 [shape = 'u32[]', space=smem, size = 0x4, offset = 0x4, fixed_abs, tag = 'smem constant byte address 0x4 - core index']
  #allocation1 [shape = 'u32[72,128]{1,0:T(1,128)}', space=vmem, size = 0x9000, scoped, tag = 'internal scratch']
  #allocation2 [shape = 'f32[16,1]{1,0:T(8,128)}', space=vmem, size = 0x2000, scoped, tag = 'scratch operand']
  %s0 = inlined_call_operand.vmem [shape: f32[16,32], index: 0, kind: input, shape index: {}]
  %s1 = inlined_call_operand.vmem [shape: s32[16,1], index: 1, kind: input, shape index: {}]
  %s2 = inlined_call_operand.hbm [shape: f32[2,8,128], index: 2, kind: output, shape index: {}]
  %s3 = sld [smem:[#allocation0]]
  $region49: #{tpu_custom_call.1} parent=0
    _
  %s5 = ssub.s32 1, %s3
  %s6 = scalar_select 0, %s5, %s3
  $region1: #{tpu_custom_call.1} parent=0
    #allocation3 [shape = 'u8[8192]{0}', space=vmem, size = 0x2000, scoped, tag = 'output window, operand 0']
    #allocation4 [shape = 's32[2]{0}', space=sflag, size = 0x8, scoped, tag = 'scoped memory for tpu_custom_call.1']
    %7 = vsyncpa [#allocation4], 0
    %s8 = scalar_lea.sflag [#allocation4], 1
    %9 = vsyncpa %s8, 0
    loop: start=0, step=1, limit=4
    $region2: #{tpu_custom_call.1} parent=1 // loop_pre_header
      _
    $region3: #{tpu_custom_call.1} parent=1 // loop_header
      %s11 = sphi 0, %s15
      %p12 = scmp.ge.s32.totalorder %s11, 4
      %s18 = sphi 0, %s30
      %s19 = sphi 0, %s26
      %s20 = sphi 0, %s18
      %s21 = sphi 0, %s19
      %s22 = sphi 0, %s20
      %s23 = sphi 0, %s21
      %s39 = sphi 0, %s41
      %s42 = sphi 0, %s39
      %s43 = sphi 0, %s42
      %s59 = sphi 0, %s43
      %s71 = sphi 0, %s73
      %s74 = sphi 0, %s71
      %s75 = sphi 0, %s74
      %s91 = sphi 0, %s75
      %s97 = sphi 0, %s99
      %s100 = sphi 0, %s97
      %s101 = sphi 0, %s100
      %s117 = sphi 0, %s101
    $region4: #{tpu_custom_call.1} parent=1 // loop_header_branch
      %14 = sbr.rel (%p12) target = $region8
    $region5: #{tpu_custom_call.1} parent=1 // loop_body
      %s16 = ssub.s32 %s11, 1
      %s17 = ssub.s32 %s11, 2
      %s24 = sadd.s32 1, %s19
      %p25 = scmp.ge.s32.totalorder %s24, 1
      %s26 = scalar_select %p25, 0, %s24
      %s27 = sadd.s32 1, %s18
      %s28 = scalar_select %p25, %s27, %s18
      %p29 = scmp.ge.s32.totalorder %s28, 2
      %s30 = scalar_select %p29, 0, %s28
      %s31 = sadd.s32 %s18, %s19
      %p32 = scmp.lt.s32.totalorder %s31, 0
      %s33 = scalar_select %p32, %s31, 0
      %s34 = sadd.s32 %s30, %s26
      %p35 = scmp.lt.s32.totalorder %s34, 0
      %s36 = scalar_select %p35, %s34, 0
      %s37 = ssub.s32 %s33, %s36
      %p38 = scmp.eq.s32.totalorder %s37, 0
      %s40 = sadd.s32 %s39, 1
      %s41 = scalar_select %p38, %s39, %s40
      %p44 = pneg %p38
      %p45 = scmp.eq.s32.totalorder %s11, 1
      %p46 = por %p44, %p45
      %p47 = scmp.ne.s32.totalorder %s39, %s42
      %p48 = scmp.eq.s32.totalorder %s11, 0
      %p49 = por %p47, %p48
      %p50 = scmp.ne.s32.totalorder %s39, %s42
      %p51 = scmp.eq.s32.totalorder %s16, 1
      %p52 = por %p50, %p51
      %p53 = scmp.ne.s32.totalorder %s42, %s43
      %p54 = scmp.eq.s32.totalorder %s16, 0
      %p55 = por %p53, %p54
      %p56 = scmp.ne.s32.totalorder %s42, %s43
      %p57 = scmp.eq.s32.totalorder %s17, 1
      %p58 = por %p56, %p57
      %p60 = scmp.ne.s32.totalorder %s43, %s59
      %p61 = scmp.eq.s32.totalorder %s17, 0
      %p62 = por %p60, %p61
      %s63 = sadd.s32 %s18, %s19
      %p64 = scmp.lt.s32.totalorder %s63, 0
      %s65 = scalar_select %p64, %s63, 0
      %s66 = sadd.s32 %s30, %s26
      %p67 = scmp.lt.s32.totalorder %s66, 0
      %s68 = scalar_select %p67, %s66, 0
      %s69 = ssub.s32 %s65, %s68
      %p70 = scmp.eq.s32.totalorder %s69, 0
      %s72 = sadd.s32 %s71, 1
      %s73 = scalar_select %p70, %s71, %s72
      %p76 = pneg %p70
      %p77 = scmp.eq.s32.totalorder %s11, 1
      %p78 = por %p76, %p77
      %p79 = scmp.ne.s32.totalorder %s71, %s74
      %p80 = scmp.eq.s32.totalorder %s11, 0
      %p81 = por %p79, %p80
      %p82 = scmp.ne.s32.totalorder %s71, %s74
      %p83 = scmp.eq.s32.totalorder %s16, 1
      %p84 = por %p82, %p83
      %p85 = scmp.ne.s32.totalorder %s74, %s75
      %p86 = scmp.eq.s32.totalorder %s16, 0
      %p87 = por %p85, %p86
      %p88 = scmp.ne.s32.totalorder %s74, %s75
      %p89 = scmp.eq.s32.totalorder %s17, 1
      %p90 = por %p88, %p89
      %p92 = scmp.ne.s32.totalorder %s75, %s91
      %p93 = scmp.eq.s32.totalorder %s17, 0
      %p94 = por %p92, %p93
      %s95 = ssub.s32 %s18, %s30
      %p96 = scmp.eq.s32.totalorder %s95, 0
      %s98 = sadd.s32 %s97, 1
      %s99 = scalar_select %p96, %s97, %s98
      %p102 = pneg %p96
      %p103 = scmp.eq.s32.totalorder %s11, 1
      %p104 = por %p102, %p103
      %p105 = scmp.ne.s32.totalorder %s97, %s100
      %p106 = scmp.eq.s32.totalorder %s11, 0
      %p107 = por %p105, %p106
      %p108 = scmp.ne.s32.totalorder %s97, %s100
      %p109 = scmp.eq.s32.totalorder %s16, 1
      %p110 = por %p108, %p109
      %p111 = scmp.ne.s32.totalorder %s100, %s101
      %p112 = scmp.eq.s32.totalorder %s16, 0
      %p113 = por %p111, %p112
      %p114 = scmp.ne.s32.totalorder %s100, %s101
      %p115 = scmp.eq.s32.totalorder %s17, 1
      %p116 = por %p114, %p115
      %p118 = scmp.ne.s32.totalorder %s101, %s117
      %p119 = scmp.eq.s32.totalorder %s17, 0
      %p120 = por %p118, %p119
      %p121 = scmp.le.s32.totalorder 1, %s11
      %p122 = scmp.lt.s32.totalorder %s11, 3
      %p123 = pnand %p121, %p122
      %p124 = pneg %p123
      // Predicated region
      $region9: #{tpu_custom_call.1} parent=5 // pred_check
        _
      $region10: #{tpu_custom_call.1} parent=5 // pred_check_branch
        %126 = sbr.rel (%p123) target = $region12
      $region11: #{tpu_custom_call.1} parent=5 // pred_region
        %s127 = ssub.s32 %s11, 1
      $region12: #{tpu_custom_call.1} parent=5 // pred_fallthru
        _
      %p128 = scmp.lt.s32.totalorder %s11, 2
      // Predicated region
      $region13: #{tpu_custom_call.1} parent=5 // pred_check
        %p129 = pneg %p128
      $region14: #{tpu_custom_call.1} parent=5 // pred_check_branch
        %131 = sbr.rel (%p129) target = $region16
      $region15: #{tpu_custom_call.1} parent=5 // pred_region
        // Predicated region
        $region17: #{tpu_custom_call.1} parent=15 // pred_check
          %p132 = pneg %p49
        $region18: #{tpu_custom_call.1} parent=15 // pred_check_branch
          %134 = sbr.rel (%p132) target = $region20
        $region19: #{tpu_custom_call.1} parent=15 // pred_region
          %s135 = sadd.s32 %s18, %s19
          %p136 = scmp.lt.s32.totalorder %s135, 0
          %s137 = scalar_select %p136, %s135, 0
          %s138 = smul.u32 2, %s137
          %p139 = scmp.lt.s32.totalorder %s138, 1
          %s140 = scalar_select %p139, %s138, 1
          %s141 = smul.addr %s140, 8
          %s142 = scalar_lea.vmem %s0, %s141
          %s143 = sadd.s32 %s18, %s19
          %p144 = scmp.lt.s32.totalorder %s143, 0
          %s145 = scalar_select %p144, %s143, 0
          %s146 = smul.u32 2, %s145
        $region20: #{tpu_custom_call.1} parent=15 // pred_fallthru
          _
        // Predicated region
        $region21: #{tpu_custom_call.1} parent=15 // pred_check
          %p147 = pneg %p81
        $region22: #{tpu_custom_call.1} parent=15 // pred_check_branch
          %149 = sbr.rel (%p147) target = $region24
        $region23: #{tpu_custom_call.1} parent=15 // pred_region
          %s150 = sadd.s32 %s18, %s19
          %p151 = scmp.lt.s32.totalorder %s150, 0
          %s152 = scalar_select %p151, %s150, 0
          %s153 = smul.u32 2, %s152
          %p154 = scmp.lt.s32.totalorder %s153, 1
          %s155 = scalar_select %p154, %s153, 1
          %s156 = smul.addr %s155, 8
          %s157 = scalar_lea.vmem %s1, %s156
          %s158 = sadd.s32 %s18, %s19
          %p159 = scmp.lt.s32.totalorder %s158, 0
          %s160 = scalar_select %p159, %s158, 0
          %s161 = smul.u32 2, %s160
        $region24: #{tpu_custom_call.1} parent=15 // pred_fallthru
          _
      $region16: #{tpu_custom_call.1} parent=5 // pred_fallthru
        _
      %p162 = scmp.le.s32.totalorder 1, %s11
      %p163 = scmp.lt.s32.totalorder %s11, 3
      %p164 = pnand %p162, %p163
      %p165 = pneg %p164
      // Predicated region
      $region25: #{tpu_custom_call.1} parent=5 // pred_check
        _
      $region26: #{tpu_custom_call.1} parent=5 // pred_check_branch
        %167 = sbr.rel (%p164) target = $region28
      $region27: #{tpu_custom_call.1} parent=5 // pred_region
        %s168 = ssub.s32 %s11, 1
        %s169 = sadd.s32 %s20, %s21
        %p170 = scmp.lt.s32.totalorder %s169, 0
        %s171 = scalar_select %p170, %s169, 0
        %s172 = smul.u32 2, %s171
        %p173 = scmp.lt.s32.totalorder %s172, 1
        %s174 = scalar_select %p173, %s172, 1
        %s175 = smul.addr %s174, 8
        %s176 = scalar_lea.vmem %s0, %s175
        %p177 = pneg %p55
        %p178 = pneg %p52
        %s179 = sadd.s32 %s20, %s21
        %p180 = scmp.lt.s32.totalorder %s179, 0
        %s181 = scalar_select %p180, %s179, 0
        %s182 = smul.u32 2, %s181
        %p183 = scmp.lt.s32.totalorder %s182, 1
        %s184 = scalar_select %p183, %s182, 1
        %s185 = smul.addr %s184, 8
        %s186 = scalar_lea.vmem %s1, %s185
        %p187 = pneg %p87
        %p188 = pneg %p84
        %p189 = pneg %p113
        %p190 = pneg %p110
        %s191 = sand.u32 %s100, 1
        %s192 = scalar_lea.sflag [#allocation4], %s191
        %s193 = sand.u32 %s100, 1
        %s194 = smul.addr %s193, 8
        %s195 = scalar_lea.vmem [#allocation3], %s194
        %s196 = sadd.s32 %s20, %s21
        %p197 = scmp.lt.s32.totalorder %s196, 0
        %s198 = scalar_select %p197, %s196, 0
        %s199 = smul.u32 2, %s198
        %p200 = scmp.lt.s32.totalorder %s199, 1
        %s201 = scalar_select %p200, %s199, 1
        %s202 = smul.addr %s201, 8
        %s203 = scalar_lea.vmem %s0, %s202
        %s204 = sadd.s32 %s20, %s21
        %p205 = scmp.lt.s32.totalorder %s204, 0
        %s206 = scalar_select %p205, %s204, 0
        %s207 = smul.u32 2, %s206
        %s208 = sadd.s32 %s20, %s21
        %p209 = scmp.lt.s32.totalorder %s208, 0
        %s210 = scalar_select %p209, %s208, 0
        %s211 = smul.u32 2, %s210
        %p212 = scmp.lt.s32.totalorder %s211, 1
        %s213 = scalar_select %p212, %s211, 1
        %s214 = smul.addr %s213, 8
        %s215 = scalar_lea.vmem %s1, %s214
        %s216 = sadd.s32 %s20, %s21
        %p217 = scmp.lt.s32.totalorder %s216, 0
        %s218 = scalar_select %p217, %s216, 0
        %s219 = smul.u32 2, %s218
        %p220 = scmp.eq.s32.totalorder %s21, 0
        // Predicated region
        $region29: #{tpu_custom_call.1} parent=27 // pred_check
          %p221 = pneg %p220
        $region30: #{tpu_custom_call.1} parent=27 // pred_check_branch
          %223 = sbr.rel (%p221) target = $region32
        $region31: #{tpu_custom_call.1} parent=27 // pred_region
          %vm224 = vcmask 7168
          %225 = vst.msk [vmem:[#allocation2] sm:$0xff] %vm224, 0.0
          %226 = vst.msk [vmem:[#allocation2 + $0x8] sm:$0xff] %vm224, 0.0
        $region32: #{tpu_custom_call.1} parent=27 // pred_fallthru
          _
        %v227 = vld [vmem:[%s203] sm:$0xff]
        %v228 = vld [vmem:[%s203 + $0x8] sm:$0xff]
        %v229 = vld [vmem:[%s215] sm:$0xff]
        %v230 = vld [vmem:[%s215 + $0x8] sm:$0xff]
        %vm231 = vcmask 261120
        %v232 = vsel %vm231, %v227, -inf
        %233 = vmax.xlane.f32.xlu0 %v232
        %v234 = vpop.xlane.xlu0 %233
        %v235 = vsel %vm231, %v228, -inf
        %236 = vmax.xlane.f32.xlu0 %v235
        %v237 = vpop.xlane.xlu0 %236
        %v238 = vsub.f32 %v227, %v234
        %v239 = vsub.f32 %v228, %v237
        %v240 = vmul.f32 %v238, 1.442695
        %v241 = vpow.pop %v240
        %v242 = vmul.f32 %v239, 1.442695
        %v243 = vpow.pop %v242
        %v244 = vsel %vm231, %v241, 0.0
        %245 = vadd.xlane.f32.xlu0 %v244
        %v246 = vpop.xlane.xlu0 %245
        %v247 = vsel %vm231, %v243, 0.0
        %248 = vadd.xlane.f32.xlu0 %v247
        %v249 = vpop.xlane.xlu0 %248
        %v250 = vlog2.pop %v246
        %v251 = vmul.f32 %v250, 0.6931472
        %v252 = vlog2.pop %v249
        %v253 = vmul.f32 %v252, 0.6931472
        %v254 = vlaneseq
        %v255 = vand.u32 %v254, 127
        %256 = vset.pattern.permute.xlu0 0
        %257 = vperm.xlu0 %256, %v229
        %v258 = vpop.permute.xlu0 %257
        %259 = vset.pattern.permute.xlu0 0
        %260 = vperm.xlu0 %259, %v230
        %v261 = vpop.permute.xlu0 %260
        %vm262 = vcmp.eq.s32.totalorder %v255, %v258
        %vm263 = vcmp.eq.s32.totalorder %v255, %v261
        %v264 = vsel %vm262, %v238, 0.0
        %v265 = vsel %vm263, %v239, 0.0
        %v266 = vsel %vm231, %v264, 0.0
        %267 = vadd.xlane.f32.xlu0 %v266
        %v268 = vpop.xlane.xlu0 %267
        %v269 = vsel %vm231, %v265, 0.0
        %270 = vadd.xlane.f32.xlu0 %v269
        %v271 = vpop.xlane.xlu0 %270
        %v272 = vsub.f32 %v268, %v251
        %v273 = vsub.f32 %v271, %v253
        %v274 = vmul.f32 %v272, 1.442695
        %v275 = vpow.pop %v274
        %v276 = vmul.f32 %v273, 1.442695
        %v277 = vpow.pop %v276
        %v278 = vsub.f32 1.0, %v275
        %v279 = vsub.f32 1.0, %v277
        %v280 = vmul.f32 %v278, %v278
        %v281 = vmul.f32 %v279, %v279
        %v282 = vsub.f32 0.0, %v272
        %v283 = vsub.f32 0.0, %v273
        %v284 = vmul.f32 %v280, %v282
        %v285 = vmul.f32 %v281, %v283
        %s286 = sadd.s32 %s20, %s21
        %s287 = smul.u32 %s286, 16
        %v288 = vlaneseq
        %v289 = vshrl.u32 %v288, 7
        %v290 = vadd.s32 %v289, 8
        %v291 = vstv %s287
        %v292 = vadd.s32 %v291, %v289
        %v293 = vadd.s32 %v291, %v290
        %vm294 = vcmp.lt.s32.totalorder %v292, 16
        %vm295 = vcmp.lt.s32.totalorder %v293, 16
        %v296 = vsel %vm294, %v284, 0.0
        %v297 = vsel %vm295, %v285, 0.0
        %v298 = vld [vmem:[#allocation2] sm:$0xff]
        %v299 = vld [vmem:[#allocation2 + $0x8] sm:$0xff]
        %v300 = vadd.f32 %v298, %v296
        %v301 = vadd.f32 %v299, %v297
        %vm302 = vcmask 7168
        %303 = vst.msk [vmem:[#allocation2] sm:$0xff] %vm302, %v300
        %304 = vst.msk [vmem:[#allocation2 + $0x8] sm:$0xff] %vm302, %v301
        // Predicated region
        $region33: #{tpu_custom_call.1} parent=27 // pred_check
          %p305 = pneg %p220
        $region34: #{tpu_custom_call.1} parent=27 // pred_check_branch
          %307 = sbr.rel (%p305) target = $region36
        $region35: #{tpu_custom_call.1} parent=27 // pred_region
          %v308 = vld [vmem:[#allocation2] sm:$0xff]
          %v309 = vld [vmem:[#allocation2 + $0x8] sm:$0xff]
          %v310 = vsel %vm302, %v308, 0.0
          %v311 = vsel %vm302, %v309, 0.0
          %v312 = vadd.f32 %v310, %v311
          %313 = vadd.xlane.f32.xlu0 %v312
          %v314 = vpop.xlane.xlu0 %313
          %v315 = vrot.slane %v314, 4
          %v316 = vadd.f32 %v314, %v315
          %v317 = vrot.slane %v316, 2
          %v318 = vadd.f32 %v316, %v317
          %v319 = vrot.slane %v318, 1
          %v320 = vadd.f32 %v318, %v319
          %s321 = vtos %v320
          %v322 = vstv %s321
          %v323 = vadd.f32 %v322, 0.0
          %324 = vst [vmem:[%s195] sm:$0xff] %v323
        $region36: #{tpu_custom_call.1} parent=27 // pred_fallthru
          _
        %s325 = sand.u32 %s100, 1
        %s326 = scalar_lea.sflag [#allocation4], %s325
        %s327 = sand.u32 %s100, 1
        %s328 = smul.addr %s327, 8
        %s329 = scalar_lea.vmem [#allocation3], %s328
        // Predicated region
        $region37: #{tpu_custom_call.1} parent=27 // pred_check
          %p330 = pneg %p110
        $region38: #{tpu_custom_call.1} parent=27 // pred_check_branch
          %332 = sbr.rel (%p330) target = $region40
        $region39: #{tpu_custom_call.1} parent=27 // pred_region
          %334 = vsyncadd %s326, 0
          %s335 = smul.addr %s20, 8
          %s336 = scalar_lea.hbm %s2, %s335
          %s338 = sshll.u32 %s329, 4
          %s339 = int_to_ptr.vmem [resolvable:$true] %s338
          %s340 = sshll.u32 %s336, 4
          %s341 = int_to_ptr.hbm [resolvable:$true] %s340
          %343 = dma.vmem_to_hbm [thread:$0]  %s339, 128, %s341, %s326
        $region40: #{tpu_custom_call.1} parent=27 // pred_fallthru
          _
      $region28: #{tpu_custom_call.1} parent=5 // pred_fallthru
        _
      %p344 = scmp.le.s32.totalorder 2, %s11
      // Predicated region
      $region41: #{tpu_custom_call.1} parent=5 // pred_check
        %p345 = pneg %p344
      $region42: #{tpu_custom_call.1} parent=5 // pred_check_branch
        %347 = sbr.rel (%p345) target = $region44
      $region43: #{tpu_custom_call.1} parent=5 // pred_region
        %s348 = ssub.s32 %s11, 2
        // Predicated region
        $region45: #{tpu_custom_call.1} parent=43 // pred_check
          %p349 = pneg %p116
        $region46: #{tpu_custom_call.1} parent=43 // pred_check_branch
          %351 = sbr.rel (%p349) target = $region48
        $region47: #{tpu_custom_call.1} parent=43 // pred_region
          %s352 = sand.u32 %s101, 1
          %s353 = scalar_lea.sflag [#allocation4], %s352
          %s354 = sand.u32 %s101, 1
          %s355 = smul.addr %s354, 8
          %s356 = scalar_lea.vmem [#allocation3], %s355
          %358 = dma.done %s353, 128
        $region48: #{tpu_custom_call.1} parent=43 // pred_fallthru
          _
      $region44: #{tpu_custom_call.1} parent=5 // pred_fallthru
        _
    $region6: #{tpu_custom_call.1} parent=1 // loop_footer
      %s15 = sadd.s32 1, %s11
    $region7: #{tpu_custom_call.1} parent=1 // loop_footer_branch
      %10 = sbr.rel target = $region3
    $region8: #{tpu_custom_call.1} parent=1 // loop_exit
      _
    %359 = vsyncpa [#allocation4], 1
    %s360 = scalar_lea.sflag [#allocation4], 1
    %361 = vsyncpa %s360, 1

</llo_original>
